<compile_context>
chip_gen: v6e
topology: v6e:2x2x1
jax: 0.10.0
libtpu: 0.0.40
codegen_flags: <defaults>
</compile_context>

<pallas_src>
import functools

import jax
import jax.numpy as jnp
from jax import lax
from jax.experimental import pallas as pl
from jax.experimental.pallas import tpu as pltpu


def _round_up(x, m):
    return (x + m - 1) // m * m


# ----------------------------------------------------------------------------
# Aux parameter pack: one (AUX_ROWS, Tp*Tp) f32 slab.
# ----------------------------------------------------------------------------
AUX_BD = 0      # row 0      : decoder bias tiled Tp times: bd_wide[t*Tp + k] = bd[k]
AUX_BE = 1      # row 1      : encoder bias replicated across all lanes
AUX_WO_T = 2    # rows 2..5  : out weight transposed (4, Tp) in lanes [0:Tp]
AUX_BO = 6      # row 6      : out bias in lanes [0:4]
AUX_ROWS = 8    # padded to a full sublane tile


def _box_predictor_kernel(x_ref, wdbig_ref, swe_ref, aux_ref, out_ref, *, t_pad):
    # --- decoder Linear(4, T) for all T time steps: ONE MXU matmul -----------
    # (Bt, 4*Tp) @ (4*Tp, Tp*Tp) -> (Bt, Tp*Tp); WD_big is block-diagonal.
    dec = jnp.dot(x_ref[...], wdbig_ref[...],
                  preferred_element_type=jnp.float32)
    act1 = jnp.maximum(dec + aux_ref[AUX_BD:AUX_BD + 1, :], 0.0)       # VPU

    # --- encoder Linear(T, 1): `* we` + per-time reduce fused into matmul ----
    # (Bt, Tp*Tp) @ (Tp*Tp, Tp) -> (Bt, Tp); S_we is block-diagonal.
    enc = jnp.dot(act1, swe_ref[...], preferred_element_type=jnp.float32)
    act2 = jax.nn.sigmoid(enc + aux_ref[AUX_BE:AUX_BE + 1, 0:t_pad])   # EUP

    # --- out Linear(T, 4) -----------------------------------------------------
    # Contract act2 (Bt, Tp) with the tiny stored wo^T (4, Tp) on the T axis:
    # the big operand is never transposed; only the 4-row weight would be.
    wo_t = aux_ref[AUX_WO_T:AUX_WO_T + 4, 0:t_pad]                     # (4, Tp)
    out = lax.dot_general(act2, wo_t,
                          dimension_numbers=(((1,), (1,)), ((), ())),
                          preferred_element_type=jnp.float32)          # (Bt, 4)
    out_ref[...] = out + aux_ref[AUX_BO:AUX_BO + 1, 0:4]


def _pick_b_tile(B):
    """Default batch tile: 1 step for small B, >=2 'parallel' steps for B>=256."""
    if B < 256:
        return B
    b_tile = 128
    while (b_tile * 2 <= 256 and B % (b_tile * 2) == 0
           and B // (b_tile * 2) >= 2):
        b_tile *= 2
    if B % b_tile != 0:
        return B        # awkward batch size: fall back to a single step
    return b_tile


def box_predictor_forward(x, wd_big, s_we, aux, *, b_tile=None):
    """x: (B, T, 4) f32; packed params from pack_params -> (B, 4) f32."""
    B, T, F = x.shape
    assert F == 4
    t_pad = wd_big.shape[0] // 4
    assert wd_big.shape == (4 * t_pad, t_pad * t_pad)
    assert s_we.shape == (t_pad * t_pad, t_pad)
    assert aux.shape == (AUX_ROWS, t_pad * t_pad)
    assert t_pad % 8 == 0 and t_pad >= T

    # Lane-dense x: zero-pad time to Tp and fold (time, feature) into lanes.
    if t_pad != T:
        x = jnp.pad(x, ((0, 0), (0, t_pad - T), (0, 0)))
    x_wide = x.reshape(B, t_pad * 4)          # x_wide[b, t*4 + f] = x[b, t, f]

    if b_tile is None:
        b_tile = _pick_b_tile(B)
    assert B % b_tile == 0
    assert b_tile == B or b_tile % 8 == 0

    # Explicit VMEM budget: double-buffered x/out blocks + grid-resident params
    # + the (Bt, Tp*Tp) intermediates, with 2x headroom; capped at 48 MiB so we
    # stay inside v7x's 64 MiB physical VMEM (v5e/v6e have 128 MiB).
    f32 = 4
    live = (2 * b_tile * 4 * t_pad * f32                       # x block
            + 2 * b_tile * 128 * f32                           # out block (lane-padded)
            + 2 * (wd_big.size + s_we.size + aux.size) * f32   # resident params
            + 3 * b_tile * t_pad * t_pad * f32)                # dec/act1 temporaries
    assert 2 * live <= (48 << 20), (
        f"b_tile={b_tile}: working set ~{live / 2**20:.1f} MiB; choose a "
        f"smaller b_tile (v7x has only 64 MiB VMEM per TensorCore)")
    vmem_limit = int(min(max(2 * live, 16 << 20), 48 << 20))

    cost = pl.CostEstimate(
        # useful math flops (decode + encode + out), not the structural-zero MXU work
        flops=int(2 * B * t_pad * t_pad * 4 + 2 * B * t_pad * t_pad + 2 * B * t_pad * 4),
        transcendentals=int(B * t_pad),                        # sigmoid
        bytes_accessed=int((x_wide.size + wd_big.size + s_we.size
                            + aux.size + B * 4) * f32),
    )

    kernel = functools.partial(_box_predictor_kernel, t_pad=t_pad)
    out = pl.pallas_call(
        kernel,
        out_shape=jax.ShapeDtypeStruct((B, 4), jnp.float32),
        grid=(B // b_tile,),
        in_specs=[
            pl.BlockSpec((b_tile, 4 * t_pad), lambda i: (i, 0)),          # x tile
            pl.BlockSpec((4 * t_pad, t_pad * t_pad), lambda i: (0, 0)),   # resident
            pl.BlockSpec((t_pad * t_pad, t_pad), lambda i: (0, 0)),       # resident
            pl.BlockSpec((AUX_ROWS, t_pad * t_pad), lambda i: (0, 0)),    # resident
        ],
        out_specs=pl.BlockSpec((b_tile, 4), lambda i: (i, 0)),
        compiler_params=pltpu.CompilerParams(
            dimension_semantics=("parallel",),    # batch tiles -> v7x megacore
            vmem_limit_bytes=vmem_limit,
        ),
        cost_estimate=cost,
    )(x_wide, wd_big, s_we, aux)
    return out


# ----------------------------------------------------------------------------
# Parameter construction / packing / pure-JAX reference
# ----------------------------------------------------------------------------
def init_params(key, time_series):
    """nn.Linear-style init (uniform +/- 1/sqrt(fan_in)); weights stored (in, out)."""
    ks = jax.random.split(key, 6)

    def lin(kw, kb, fan_in, fan_out):
        bound = 1.0 / jnp.sqrt(jnp.float32(fan_in))
        w = jax.random.uniform(kw, (fan_in, fan_out), jnp.float32, -bound, bound)
        b = jax.random.uniform(kb, (fan_out,), jnp.float32, -bound, bound)
        return w, b

    wd, bd = lin(ks[0], ks[1], 4, time_series)            # decoder: Linear(4, T)
    we, be = lin(ks[2], ks[3], time_series, 1)            # encoder: Linear(T, 1)
    wo, bo = lin(ks[4], ks[5], time_series, 4)            # out:     Linear(T, 4)
    return wd, bd, we[:, 0], be[0], wo, bo


def pack_params(params, time_series):
    """Expand weights into the block-diagonal MXU operands + one small aux slab."""
    wd, bd, we_row, be, wo, bo = params
    T = time_series
    t_pad = _round_up(max(T, 8), 8)
    # Block-diagonal decode pack scales as 16*Tp^3 bytes; fine for the module's
    # default time_series=30.  For very long series use a flattened
    # (B*T, 4) @ (4, T) decode instead.
    assert 16 * t_pad ** 3 <= (32 << 20), "time_series too large for this packing"

    # Zero-pad to Tp.  wo's padded rows MUST be zero: otherwise sigmoid(be) on
    # padded time steps would leak into the output.
    wd_p = jnp.zeros((4, t_pad), jnp.float32).at[:, :T].set(wd)
    bd_p = jnp.zeros((t_pad,), jnp.float32).at[:T].set(bd)
    we_p = jnp.zeros((t_pad,), jnp.float32).at[:T].set(we_row)
    wo_p = jnp.zeros((t_pad, 4), jnp.float32).at[:T, :].set(wo)

    eye = jnp.eye(t_pad, dtype=jnp.float32)
    wd_big = jnp.kron(eye, wd_p)              # (4*Tp, Tp*Tp): WD_big[t*4+f, t*Tp+k] = wd[f,k]
    s_we = jnp.kron(eye, we_p[:, None])       # (Tp*Tp, Tp):   S_we[t*Tp+k, t]    = we[k]

    aux = jnp.zeros((AUX_ROWS, t_pad * t_pad), jnp.float32)
    aux = aux.at[AUX_BD, :].set(jnp.tile(bd_p, t_pad))                    # bd_wide
    aux = aux.at[AUX_BE, :].set(jnp.full((t_pad * t_pad,), be, jnp.float32))
    aux = aux.at[AUX_WO_T:AUX_WO_T + 4, :t_pad].set(wo_p.T)               # wo^T
    aux = aux.at[AUX_BO, :4].set(bo)
    return wd_big, s_we, aux


def reference_forward(x, params):
    """Pure-JAX reference of the PyTorch forward (uses unpacked params)."""
    wd, bd, we_row, be, wo, bo = params
    hi = jax.lax.Precision.HIGHEST
    decode = jnp.einsum('btf,fk->btk', x, wd, precision=hi) + bd[None, None, :]
    act1 = jnp.maximum(decode, 0.0)
    encoded = jnp.einsum('btk,k->bt', act1, we_row, precision=hi) + be
    act2 = jax.nn.sigmoid(encoded)
    return jnp.dot(act2, wo, precision=hi) + bo[None, :]


if __name__ == "__main__":
    TIME_SERIES = 8   # small stand-in for the default 30
    B = 2

    key = jax.random.PRNGKey(0)
    k_params, k_x = jax.random.split(key)
    params = init_params(k_params, TIME_SERIES)
    wd_big, s_we, aux = pack_params(params, TIME_SERIES)

    # bbox_sequence: (B, T, 4)
    x = jax.random.normal(k_x, (B, TIME_SERIES, 4), jnp.float32)

    fwd = jax.jit(box_predictor_forward)
    out = jax.block_until_ready(fwd(x, wd_big, s_we, aux))

    ref = reference_forward(x, params)
    assert out.shape == (B, 4), out.shape
    max_err = float(jnp.max(jnp.abs(out - ref)))
    assert jnp.allclose(out, ref, atol=1e-4, rtol=1e-4), (max_err, out, ref)

    print("KERNEL_OK")
</pallas_src>

<mosaic_0001>
module attributes {stable_mosaic.version = 11 : i64} {
  func.func @_box_predictor_kernel(%arg0: i32, %arg1: memref<2x32xf32, #tpu.memory_space<vmem>>, %arg2: memref<32x64xf32, #tpu.memory_space<vmem>>, %arg3: memref<64x8xf32, #tpu.memory_space<vmem>>, %arg4: memref<8x64xf32, #tpu.memory_space<vmem>>, %arg5: memref<2x4xf32, #tpu.memory_space<vmem>>) attributes {dimension_semantics = [#tpu.dimension_semantics<parallel>], iteration_bounds = array<i64: 1>, scalar_prefetch = 0 : i64, scratch_operands = 0 : i64, tpu.core_type = #tpu.core_type<tc>, window_params = [{transform_indices = @transform_0, window_bounds = array<i64: 2, 32>}, {pipeline_mode = #tpu.pipeline_mode<synchronous>, transform_indices = @transform_1, window_bounds = array<i64: 32, 64>}, {pipeline_mode = #tpu.pipeline_mode<synchronous>, transform_indices = @transform_2, window_bounds = array<i64: 64, 8>}, {pipeline_mode = #tpu.pipeline_mode<synchronous>, transform_indices = @transform_3, window_bounds = array<i64: 8, 64>}, {transform_indices = @transform_4, window_bounds = array<i64: 2, 4>}]} {
    %c0 = arith.constant 0 : index
    %c0_0 = arith.constant 0 : index
    %0 = vector.load %arg1[%c0, %c0_0] : memref<2x32xf32, #tpu.memory_space<vmem>>, vector<2x32xf32>
    %c0_1 = arith.constant 0 : index
    %c0_2 = arith.constant 0 : index
    %1 = vector.load %arg2[%c0_1, %c0_2] : memref<32x64xf32, #tpu.memory_space<vmem>>, vector<32x64xf32>
    %cst = arith.constant dense<0.000000e+00> : vector<2x64xf32>
    %2 = tpu.matmul %0, %1, %cst {dimension_numbers = #tpu.dot_dimension_numbers<[1], [0], [0], [1], [0, 0, 1, 1], [], []>} : vector<2x32xf32>, vector<32x64xf32>, vector<2x64xf32> -> vector<2x64xf32>
    %c0_3 = arith.constant 0 : index
    %c0_4 = arith.constant 0 : index
    %3 = vector.load %arg4[%c0_3, %c0_4] : memref<8x64xf32, #tpu.memory_space<vmem>>, vector<1x64xf32>
    %4 = vector.broadcast %3 : vector<1x64xf32> to vector<2x64xf32>
    %5 = arith.addf %2, %4 : vector<2x64xf32>
    %cst_5 = arith.constant 0.000000e+00 : f32
    %6 = vector.broadcast %cst_5 : f32 to vector<2x64xf32>
    %7 = arith.maximumf %5, %6 : vector<2x64xf32>
    %c0_6 = arith.constant 0 : index
    %c0_7 = arith.constant 0 : index
    %8 = vector.load %arg3[%c0_6, %c0_7] : memref<64x8xf32, #tpu.memory_space<vmem>>, vector<64x8xf32>
    %cst_8 = arith.constant dense<0.000000e+00> : vector<2x8xf32>
    %9 = tpu.matmul %7, %8, %cst_8 {dimension_numbers = #tpu.dot_dimension_numbers<[1], [0], [0], [1], [0, 0, 1, 1], [], []>} : vector<2x64xf32>, vector<64x8xf32>, vector<2x8xf32> -> vector<2x8xf32>
    %c1 = arith.constant 1 : index
    %c0_9 = arith.constant 0 : index
    %10 = vector.load %arg4[%c1, %c0_9] : memref<8x64xf32, #tpu.memory_space<vmem>>, vector<1x8xf32>
    %11 = vector.broadcast %10 : vector<1x8xf32> to vector<2x8xf32>
    %12 = arith.addf %9, %11 : vector<2x8xf32>
    %13 = arith.negf %12 : vector<2x8xf32>
    %14 = math.exp %13 : vector<2x8xf32>
    %cst_10 = arith.constant 1.000000e+00 : f32
    %15 = vector.broadcast %cst_10 : f32 to vector<2x8xf32>
    %16 = arith.addf %15, %14 : vector<2x8xf32>
    %17 = arith.divf %15, %16 : vector<2x8xf32>
    %c2 = arith.constant 2 : index
    %c0_11 = arith.constant 0 : index
    %18 = vector.load %arg4[%c2, %c0_11] : memref<8x64xf32, #tpu.memory_space<vmem>>, vector<4x8xf32>
    %cst_12 = arith.constant dense<0.000000e+00> : vector<2x4xf32>
    %19 = tpu.matmul %17, %18, %cst_12 {dimension_numbers = #tpu.dot_dimension_numbers<[1], [1], [0], [0], [0, 0, 1, 0], [], []>} : vector<2x8xf32>, vector<4x8xf32>, vector<2x4xf32> -> vector<2x4xf32>
    %c6 = arith.constant 6 : index
    %c0_13 = arith.constant 0 : index
    %20 = vector.load %arg4[%c6, %c0_13] : memref<8x64xf32, #tpu.memory_space<vmem>>, vector<1x4xf32>
    %21 = vector.broadcast %20 : vector<1x4xf32> to vector<2x4xf32>
    %22 = arith.addf %19, %21 : vector<2x4xf32>
    %c0_14 = arith.constant 0 : index
    %c0_15 = arith.constant 0 : index
    %23 = vector.load %arg5[%c0_14, %c0_15] : memref<2x4xf32, #tpu.memory_space<vmem>>, vector<2x4xf32>
    tpu.vector_store %arg5[%c0_14, %c0_15], %22 {strides = array<i32>} : memref<2x4xf32, #tpu.memory_space<vmem>>, vector<2x4xf32>,
    return
  }
  func.func @transform_0(%arg0: i32) -> (i32, i32) {
    %c0_i32 = arith.constant 0 : i32
    %c0_i32_0 = arith.constant 0 : i32
    return %arg0, %c0_i32 : i32, i32
  }
  func.func @transform_1(%arg0: i32) -> (i32, i32) {
    %c0_i32 = arith.constant 0 : i32
    %c0_i32_0 = arith.constant 0 : i32
    %c0_i32_1 = arith.constant 0 : i32
    return %c0_i32, %c0_i32_0 : i32, i32
  }
  func.func @transform_2(%arg0: i32) -> (i32, i32) {
    %c0_i32 = arith.constant 0 : i32
    %c0_i32_0 = arith.constant 0 : i32
    %c0_i32_1 = arith.constant 0 : i32
    return %c0_i32, %c0_i32_0 : i32, i32
  }
  func.func @transform_3(%arg0: i32) -> (i32, i32) {
    %c0_i32 = arith.constant 0 : i32
    %c0_i32_0 = arith.constant 0 : i32
    %c0_i32_1 = arith.constant 0 : i32
    return %c0_i32, %c0_i32_0 : i32, i32
  }
  func.func @transform_4(%arg0: i32) -> (i32, i32) {
    %c0_i32 = arith.constant 0 : i32
    %c0_i32_0 = arith.constant 0 : i32
    return %arg0, %c0_i32 : i32, i32
  }
}

</mosaic_0001>

<llo_original>
// kernel: box_predictor_forward.1
$region0: #{box_predictor_forward.1}
  #allocation0 [shape = 'u32[]', space=smem, size = 0x4, offset = 0x4, fixed_abs, tag = 'smem constant byte address 0x4 - core index']
  #allocation1 [shape = 'u32[144,128]{1,0:T(1,128)}', space=vmem, size = 0x12000, scoped, tag = 'internal scratch']
  %s0 = inlined_call_operand.vmem [shape: f32[2,32], index: 0, kind: input, shape index: {}]
  %s1 = inlined_call_operand.vmem [shape: f32[32,64], index: 1, kind: input, shape index: {}]
  %s2 = inlined_call_operand.vmem [shape: f32[64,8], index: 2, kind: input, shape index: {}]
  %s3 = inlined_call_operand.vmem [shape: f32[8,64], index: 3, kind: input, shape index: {}]
  %s4 = inlined_call_operand.hbm [shape: f32[2,4], index: 4, kind: output, shape index: {}]
  %s5 = sld [smem:[#allocation0]]
  $region26: #{box_predictor_forward.1} parent=0
    _
  %s7 = ssub.s32 1, %s5
  %s8 = scalar_select 0, %s7, %s5
  $region1: #{box_predictor_forward.1} parent=0
    #allocation2 [shape = 'u8[1024]{0}', space=vmem, size = 0x400, scoped, tag = 'output window, operand 0, single buffered']
    #allocation3 [shape = 's32[1]{0}', space=sflag, size = 0x4, scoped, tag = 'scoped memory for box_predictor_forward.1']
    %9 = vsyncpa [#allocation3], 0
    // Predicated region
    $region2: #{box_predictor_forward.1} parent=1 // pred_check
      _
    $region3: #{box_predictor_forward.1} parent=1 // pred_check_branch
      %11 = sbr.rel (0) target = $region5
    $region4: #{box_predictor_forward.1} parent=1 // pred_region
      _
    $region5: #{box_predictor_forward.1} parent=1 // pred_fallthru
      _
    // Predicated region
    $region6: #{box_predictor_forward.1} parent=1 // pred_check
      _
    $region7: #{box_predictor_forward.1} parent=1 // pred_check_branch
      %13 = sbr.rel (0) target = $region9
    $region8: #{box_predictor_forward.1} parent=1 // pred_region
      _
    $region9: #{box_predictor_forward.1} parent=1 // pred_fallthru
      _
    // Predicated region
    $region10: #{box_predictor_forward.1} parent=1 // pred_check
      _
    $region11: #{box_predictor_forward.1} parent=1 // pred_check_branch
      %15 = sbr.rel (0) target = $region13
    $region12: #{box_predictor_forward.1} parent=1 // pred_region
      _
    $region13: #{box_predictor_forward.1} parent=1 // pred_fallthru
      _
    // Predicated region
    $region14: #{box_predictor_forward.1} parent=1 // pred_check
      _
    $region15: #{box_predictor_forward.1} parent=1 // pred_check_branch
      %17 = sbr.rel (0) target = $region17
    $region16: #{box_predictor_forward.1} parent=1 // pred_region
      _
    $region17: #{box_predictor_forward.1} parent=1 // pred_fallthru
      _
    %v18 = vld [vmem:[%s0] sm:$0x3]
    %v19 = vld [vmem:[%s1] sm:$0xff]
    %v20 = vld [vmem:[%s1 + $0x8] sm:$0xff]
    %v21 = vld [vmem:[%s1 + $0x10] sm:$0xff]
    %v22 = vld [vmem:[%s1 + $0x18] sm:$0xff]
    %v23 = vld [vmem:[%s3] sm:$0x1]
    %v24 = vlaneseq
    %v25 = vshrl.u32 %v24, 7
    %v26 = vsub.s32 0, %v25
    %v27 = vrot.slane %v23, %v26
    %vm28 = vcmask 261120
    %v30 = vsel %vm28, %v18, 0
    %32 = vmatprep.subr.mxu0 0.0
    %33 = vmatpush1.msra.mxu0 0.0
    %34 = vmatprep.subr.mxu0 0.0
    %35 = vmatpush1.msra.mxu0 0.0
    %36 = vmatprep.subr.mxu0 0.0
    %37 = vmatpush1.msra.mxu0 0.0
    %38 = vmatprep.subr.mxu0 0.0
    %39 = vmatpush1.msra.mxu0 0.0
    %40 = vmatprep.subr.mxu0 0.0
    %41 = vmatpush1.msra.mxu0 0.0
    %42 = vmatprep.subr.mxu0 0.0
    %43 = vmatpush1.msra.mxu0 0.0
    %44 = vmatprep.subr.mxu0 0.0
    %45 = vmatpush1.msra.mxu0 0.0
    %46 = vmatprep.subr.mxu0 0.0
    %47 = vmatpush1.msra.mxu0 0.0
    %48 = vmatprep.subr.mxu0 0.0
    %49 = vmatpush1.msra.mxu0 0.0
    %50 = vmatprep.subr.mxu0 0.0
    %51 = vmatpush1.msra.mxu0 0.0
    %52 = vmatprep.subr.mxu0 0.0
    %53 = vmatpush1.msra.mxu0 0.0
    %54 = vmatprep.subr.mxu0 0.0
    %55 = vmatpush1.msra.mxu0 0.0
    %56 = vmatprep.subr.mxu0 0.0
    %57 = vmatpush1.msra.mxu0 %v22
    %58 = vmatprep.subr.mxu0 0.0
    %59 = vmatpush1.msra.mxu0 %v21
    %60 = vmatprep.subr.mxu0 0.0
    %61 = vmatpush1.msra.mxu0 %v20
    %62 = vmatprep.subr.mxu0 0.0
    %63 = vmatpush1.msra.mxu0 %v19
    %64 = vmatprep.subr.mxu0 0.0
    %65 = vmatpush2.msra.mxu0 0.0
    %66 = vmatprep.subr.mxu0 0.0
    %67 = vmatpush2.msra.mxu0 0.0
    %68 = vmatprep.subr.mxu0 0.0
    %69 = vmatpush2.msra.mxu0 0.0
    %70 = vmatprep.subr.mxu0 0.0
    %71 = vmatpush2.msra.mxu0 0.0
    %72 = vmatprep.subr.mxu0 0.0
    %73 = vmatpush2.msra.mxu0 0.0
    %74 = vmatprep.subr.mxu0 0.0
    %75 = vmatpush2.msra.mxu0 0.0
    %76 = vmatprep.subr.mxu0 0.0
    %77 = vmatpush2.msra.mxu0 0.0
    %78 = vmatprep.subr.mxu0 0.0
    %79 = vmatpush2.msra.mxu0 0.0
    %80 = vmatprep.subr.mxu0 0.0
    %81 = vmatpush2.msra.mxu0 0.0
    %82 = vmatprep.subr.mxu0 0.0
    %83 = vmatpush2.msra.mxu0 0.0
    %84 = vmatprep.subr.mxu0 0.0
    %85 = vmatpush2.msra.mxu0 0.0
    %86 = vmatprep.subr.mxu0 0.0
    %87 = vmatpush2.msra.mxu0 0.0
    %88 = vmatprep.subr.mxu0 0.0
    %89 = vmatpush2.msra.mxu0 0.0
    %90 = vmatprep.subr.mxu0 0.0
    %91 = vmatpush2.msra.mxu0 0.0
    %92 = vmatprep.subr.mxu0 0.0
    %93 = vmatpush2.msra.mxu0 0.0
    %94 = vmatprep.subr.mxu0 0.0
    %95 = vmatpush2.msra.mxu0 0.0
    %96 = vmatprep.mubr.f32.mxu0 0.0
    %97 = vmatmul.mubr.f32.gmra.mxu0 %v30
    %v98 = vpop.f32.mrf.mxu0
    %v99 = vadd.f32 %v27, %v98
    %v100 = vpop.f32.mrf.mxu0
    %101 = vdwg.mxu0
    %v102 = vmax.f32 %v99, 0.0
    %v103 = vld [vmem:[%s2] sm:$0xff]
    %v104 = vld [vmem:[%s2 + $0x8] sm:$0xff]
    %v105 = vld [vmem:[%s2 + $0x10] sm:$0xff]
    %v106 = vld [vmem:[%s2 + $0x18] sm:$0xff]
    %v107 = vld [vmem:[%s2 + $0x20] sm:$0xff]
    %v108 = vld [vmem:[%s2 + $0x28] sm:$0xff]
    %v109 = vld [vmem:[%s2 + $0x30] sm:$0xff]
    %v110 = vld [vmem:[%s2 + $0x38] sm:$0xff]
    %v111 = vld [vmem:[%s3 + $0x1] sm:$0x1]
    %v112 = vlaneseq
    %v113 = vshrl.u32 %v112, 7
    %v114 = vsub.s32 0, %v113
    %v115 = vrot.slane %v111, %v114
    %vm116 = vcmask 523264
    %v118 = vsel %vm116, %v102, 0
    %120 = vmatprep.subr.mxu0 0.0
    %121 = vmatpush1.msra.mxu0 0.0
    %122 = vmatprep.subr.mxu0 0.0
    %123 = vmatpush1.msra.mxu0 0.0
    %124 = vmatprep.subr.mxu0 0.0
    %125 = vmatpush1.msra.mxu0 0.0
    %126 = vmatprep.subr.mxu0 0.0
    %127 = vmatpush1.msra.mxu0 0.0
    %128 = vmatprep.subr.mxu0 0.0
    %129 = vmatpush1.msra.mxu0 0.0
    %130 = vmatprep.subr.mxu0 0.0
    %131 = vmatpush1.msra.mxu0 0.0
    %132 = vmatprep.subr.mxu0 0.0
    %133 = vmatpush1.msra.mxu0 0.0
    %134 = vmatprep.subr.mxu0 0.0
    %135 = vmatpush1.msra.mxu0 0.0
    %136 = vmatprep.subr.mxu0 0.0
    %137 = vmatpush1.msra.mxu0 %v110
    %138 = vmatprep.subr.mxu0 0.0
    %139 = vmatpush1.msra.mxu0 %v109
    %140 = vmatprep.subr.mxu0 0.0
    %141 = vmatpush1.msra.mxu0 %v108
    %142 = vmatprep.subr.mxu0 0.0
    %143 = vmatpush1.msra.mxu0 %v107
    %144 = vmatprep.subr.mxu0 0.0
    %145 = vmatpush1.msra.mxu0 %v106
    %146 = vmatprep.subr.mxu0 0.0
    %147 = vmatpush1.msra.mxu0 %v105
    %148 = vmatprep.subr.mxu0 0.0
    %149 = vmatpush1.msra.mxu0 %v104
    %150 = vmatprep.subr.mxu0 0.0
    %151 = vmatpush1.msra.mxu0 %v103
    %152 = vmatprep.subr.mxu0 0.0
    %153 = vmatpush2.msra.mxu0 0.0
    %154 = vmatprep.subr.mxu0 0.0
    %155 = vmatpush2.msra.mxu0 0.0
    %156 = vmatprep.subr.mxu0 0.0
    %157 = vmatpush2.msra.mxu0 0.0
    %158 = vmatprep.subr.mxu0 0.0
    %159 = vmatpush2.msra.mxu0 0.0
    %160 = vmatprep.subr.mxu0 0.0
    %161 = vmatpush2.msra.mxu0 0.0
    %162 = vmatprep.subr.mxu0 0.0
    %163 = vmatpush2.msra.mxu0 0.0
    %164 = vmatprep.subr.mxu0 0.0
    %165 = vmatpush2.msra.mxu0 0.0
    %166 = vmatprep.subr.mxu0 0.0
    %167 = vmatpush2.msra.mxu0 0.0
    %168 = vmatprep.subr.mxu0 0.0
    %169 = vmatpush2.msra.mxu0 0.0
    %170 = vmatprep.subr.mxu0 0.0
    %171 = vmatpush2.msra.mxu0 0.0
    %172 = vmatprep.subr.mxu0 0.0
    %173 = vmatpush2.msra.mxu0 0.0
    %174 = vmatprep.subr.mxu0 0.0
    %175 = vmatpush2.msra.mxu0 0.0
    %176 = vmatprep.subr.mxu0 0.0
    %177 = vmatpush2.msra.mxu0 0.0
    %178 = vmatprep.subr.mxu0 0.0
    %179 = vmatpush2.msra.mxu0 0.0
    %180 = vmatprep.subr.mxu0 0.0
    %181 = vmatpush2.msra.mxu0 0.0
    %182 = vmatprep.subr.mxu0 0.0
    %183 = vmatpush2.msra.mxu0 0.0
    %184 = vmatprep.mubr.f32.mxu0 0.0
    %185 = vmatmul.mubr.f32.gmra.mxu0 %v118
    %v186 = vpop.f32.mrf.mxu0
    %v187 = vadd.f32 %v115, %v186
    %v188 = vpop.f32.mrf.mxu0
    %189 = vdwg.mxu0
    %v190 = vxor.u32 %v187, 2147483648
    %v191 = vmul.f32 %v190, 1.442695
    %v192 = vpow.pop %v191
    %v193 = vadd.f32 %v192, 1.0
    %v194 = vrcp.pop %v193
    %v195 = vmul.f32 1.0, %v194
    %v196 = vld [vmem:[%s3 + $0x2] sm:$0xf]
    %v197 = vld [vmem:[%s3 + $0x6] sm:$0x1]
    %v198 = vlaneseq
    %v199 = vshrl.u32 %v198, 7
    %v200 = vsub.s32 0, %v199
    %v201 = vrot.slane %v197, %v200
    %vm202 = vcmask 64512
    %v204 = vsel %vm202, %v195, 0
    %v207 = vsel %vm202, %v196, 0
    %209 = vmatprep.subr.mxu0 0.0
    %210 = vmatpush1.xpose.msra.mxu0 0.0
    %211 = vmatprep.subr.mxu0 0.0
    %212 = vmatpush1.xpose.msra.mxu0 0.0
    %213 = vmatprep.subr.mxu0 0.0
    %214 = vmatpush1.xpose.msra.mxu0 0.0
    %215 = vmatprep.subr.mxu0 0.0
    %216 = vmatpush1.xpose.msra.mxu0 0.0
    %217 = vmatprep.subr.mxu0 0.0
    %218 = vmatpush1.xpose.msra.mxu0 0.0
    %219 = vmatprep.subr.mxu0 0.0
    %220 = vmatpush1.xpose.msra.mxu0 0.0
    %221 = vmatprep.subr.mxu0 0.0
    %222 = vmatpush1.xpose.msra.mxu0 0.0
    %223 = vmatprep.subr.mxu0 0.0
    %224 = vmatpush1.xpose.msra.mxu0 0.0
    %225 = vmatprep.subr.mxu0 0.0
    %226 = vmatpush1.xpose.msra.mxu0 0.0
    %227 = vmatprep.subr.mxu0 0.0
    %228 = vmatpush1.xpose.msra.mxu0 0.0
    %229 = vmatprep.subr.mxu0 0.0
    %230 = vmatpush1.xpose.msra.mxu0 0.0
    %231 = vmatprep.subr.mxu0 0.0
    %232 = vmatpush1.xpose.msra.mxu0 0.0
    %233 = vmatprep.subr.mxu0 0.0
    %234 = vmatpush1.xpose.msra.mxu0 0.0
    %235 = vmatprep.subr.mxu0 0.0
    %236 = vmatpush1.xpose.msra.mxu0 0.0
    %237 = vmatprep.subr.mxu0 0.0
    %238 = vmatpush1.xpose.msra.mxu0 0.0
    %239 = vmatprep.subr.mxu0 0.0
    %240 = vmatpush1.xpose.msra.mxu0 %v207
    %241 = vmatprep.subr.mxu0 0.0
    %242 = vmatpush2.xpose.msra.mxu0 0.0
    %243 = vmatprep.subr.mxu0 0.0
    %244 = vmatpush2.xpose.msra.mxu0 0.0
    %245 = vmatprep.subr.mxu0 0.0
    %246 = vmatpush2.xpose.msra.mxu0 0.0
    %247 = vmatprep.subr.mxu0 0.0
    %248 = vmatpush2.xpose.msra.mxu0 0.0
    %249 = vmatprep.subr.mxu0 0.0
    %250 = vmatpush2.xpose.msra.mxu0 0.0
    %251 = vmatprep.subr.mxu0 0.0
    %252 = vmatpush2.xpose.msra.mxu0 0.0
    %253 = vmatprep.subr.mxu0 0.0
    %254 = vmatpush2.xpose.msra.mxu0 0.0
    %255 = vmatprep.subr.mxu0 0.0
    %256 = vmatpush2.xpose.msra.mxu0 0.0
    %257 = vmatprep.subr.mxu0 0.0
    %258 = vmatpush2.xpose.msra.mxu0 0.0
    %259 = vmatprep.subr.mxu0 0.0
    %260 = vmatpush2.xpose.msra.mxu0 0.0
    %261 = vmatprep.subr.mxu0 0.0
    %262 = vmatpush2.xpose.msra.mxu0 0.0
    %263 = vmatprep.subr.mxu0 0.0
    %264 = vmatpush2.xpose.msra.mxu0 0.0
    %265 = vmatprep.subr.mxu0 0.0
    %266 = vmatpush2.xpose.msra.mxu0 0.0
    %267 = vmatprep.subr.mxu0 0.0
    %268 = vmatpush2.xpose.msra.mxu0 0.0
    %269 = vmatprep.subr.mxu0 0.0
    %270 = vmatpush2.xpose.msra.mxu0 0.0
    %271 = vmatprep.subr.mxu0 0.0
    %272 = vmatpush2.xpose.msra.mxu0 0.0
    %273 = vmatprep.mubr.f32.mxu0 0.0
    %274 = vmatmul.mubr.f32.gmra.mxu0 %v204
    %v275 = vpop.f32.mrf.mxu0
    %v276 = vadd.f32 %v201, %v275
    %v277 = vpop.f32.mrf.mxu0
    %278 = vdwg.mxu0
    %vm279 = vcmask 25600
    %280 = vst.msk [vmem:[#allocation2] sm:$0x3] %vm279, %v276
    // Predicated region
    $region18: #{box_predictor_forward.1} parent=1 // pred_check
      _
    $region19: #{box_predictor_forward.1} parent=1 // pred_check_branch
      %282 = sbr.rel (0) target = $region21
    $region20: #{box_predictor_forward.1} parent=1 // pred_region
      %s284 = ssub.s32 32, 32
      %285 = vsyncadd [#allocation3], %s284
      %s287 = sshll.u32 [#allocation2], 4
      %s288 = int_to_ptr.vmem [resolvable:$true] %s287
      %290 = dma.vmem_to_hbm [thread:$0]  %s288, 32, %s4, [#allocation3]
    $region21: #{box_predictor_forward.1} parent=1 // pred_fallthru
      _
    // Predicated region
    $region22: #{box_predictor_forward.1} parent=1 // pred_check
      _
    $region23: #{box_predictor_forward.1} parent=1 // pred_check_branch
      %292 = sbr.rel (0) target = $region25
    $region24: #{box_predictor_forward.1} parent=1 // pred_region
      %293 = dma.done [#allocation3], 32
    $region25: #{box_predictor_forward.1} parent=1 // pred_fallthru
      _
    %294 = vsyncpa [#allocation3], 1

</llo_original>
